<compile_context>
chip_gen: v7x
topology: tpu7x:2x2x1
jax: 0.10.0
libtpu: 0.0.40
codegen_flags: <defaults>
</compile_context>

<pallas_src>
import functools
import math

import jax
import jax.numpy as jnp
from jax.experimental import pallas as pl
from jax.experimental.pallas import tpu as pltpu

_LANES = 128


def _peak_rmse_kernel(cnt_ref, starts_ref, ends_ref, pred_ref, true_ref,
                      out_ref, acc_ref, *,
                      num_slots: int, use_exp: bool, log_emphasis: float,
                      emphasis: float, block_rows: int, rows_total: int,
                      n_elems: int):
    # cnt_ref:             SMEM int32[num_tiles]            (peaks per tile)
    # starts_ref/ends_ref: SMEM int32[num_tiles*num_slots]  (packed windows)
    # pred_ref/true_ref:   VMEM (block_rows, 128)           (native dtype tile)
    # out_ref:             SMEM f32[1, 1]                   (scalar loss)
    # acc_ref:             VMEM f32[8, 128]                 (vector accumulator)
    pid = pl.program_id(0)
    nsteps = pl.num_programs(0)
    groups = block_rows // 8

    @pl.when(pid == 0)
    def _():
        acc_ref[...] = jnp.zeros_like(acc_ref)

    diff = true_ref[...].astype(jnp.float32) - pred_ref[...].astype(jnp.float32)
    sq = diff * diff

    n_peaks_here = cnt_ref[pid]
    valid_rows = rows_total - pid * block_rows        # rows of this block in-bounds
    is_full = valid_rows >= block_rows
    simple = jnp.logical_and(n_peaks_here == 0, is_full)

    # ---- hot path: no peak windows in this tile, block fully in-bounds ----
    @pl.when(simple)
    def _():
        acc_ref[...] += jnp.sum(sq.reshape(groups, 8, _LANES), axis=0)

    # ---- cold path: peak windows present and/or partial last block ----
    @pl.when(jnp.logical_not(simple))
    def _():
        row = jax.lax.broadcasted_iota(jnp.int32, (block_rows, _LANES), 0)
        col = jax.lax.broadcasted_iota(jnp.int32, (block_rows, _LANES), 1)
        idx = (row + pid * block_rows) * _LANES + col

        if use_exp:
            # emphasis**hit_count == exp(hit_count * ln(emphasis)): one EUP exp,
            # matching the reference's compounded in-place multiplies.
            count = jnp.zeros((block_rows, _LANES), jnp.int32)
            for k in range(num_slots):                 # static -> unrolled
                s = starts_ref[pid * num_slots + k]
                e = ends_ref[pid * num_slots + k]
                count = count + ((idx >= s) & (idx < e)).astype(jnp.int32)
            w = jnp.exp(count.astype(jnp.float32) * jnp.float32(log_emphasis))
        else:
            # Fallback (non-positive emphasis): multiplicative where-chain.
            w = jnp.ones((block_rows, _LANES), jnp.float32)
            for k in range(num_slots):
                s = starts_ref[pid * num_slots + k]
                e = ends_ref[pid * num_slots + k]
                m = (idx >= s) & (idx < e)
                w = jnp.where(m, w * jnp.float32(emphasis), w)

        # Mask padded / out-of-bounds elements (select, so garbage NaNs can't
        # leak through a 0*NaN).
        contrib = jnp.where(idx < n_elems, w * sq, jnp.float32(0.0))
        acc_ref[...] += jnp.sum(contrib.reshape(groups, 8, _LANES), axis=0)

    @pl.when(pid == nsteps - 1)
    def _():
        out_ref[0, 0] = jnp.sqrt(jnp.sum(acc_ref[...]) / jnp.float32(n_elems))


def _sublane_multiple(dtype) -> int:
    itemsize = jnp.dtype(dtype).itemsize
    return max(8, 32 // max(1, itemsize))     # f32 -> 8, bf16 -> 16, int8 -> 32


def modified_rmse_loss_peak_emphasis(pred_spectrum, true_spectrum, peak_indices,
                                     distance: int = 10,
                                     emphasis_factor: float = 10.0,
                                     block_rows: int = 4096):
    """Pallas equivalent of ModifiedRMSELossPeakEmphasis.forward."""
    n = int(true_spectrum.size)
    assert int(pred_spectrum.size) == n and n > 0

    sub_mult = max(_sublane_multiple(pred_spectrum.dtype),
                   _sublane_multiple(true_spectrum.dtype))
    pad_unit = sub_mult * _LANES
    n_pad = -(-n // pad_unit) * pad_unit           # <= sub_mult*128-1 extra zeros
    rows = n_pad // _LANES                         # multiple of sub_mult

    block_rows = max(sub_mult, (int(block_rows) // sub_mult) * sub_mult)
    block_rows = min(block_rows, rows)             # stays a multiple of sub_mult
    num_tiles = -(-rows // block_rows)
    grid = (num_tiles,)

    def prep(x):
        x = jnp.reshape(x, (-1,))
        if n_pad != n:
            x = jnp.pad(x, (0, n_pad - n))         # tiny tail pad only
        return jnp.reshape(x, (rows, _LANES))

    pred2 = prep(pred_spectrum)                    # native dtype, cast in-kernel
    true2 = prep(true_spectrum)

    # --- static per-tile peak-window tables (same arithmetic as the module) ---
    windows = []
    for p in (list(peak_indices) if len(peak_indices) > 0 else []):
        s = max(0, int(p) - distance // 2)
        e = min(n, int(p) + distance // 2)
        if s < e:
            windows.append((s, e))

    tile_elems = block_rows * _LANES
    per_tile = [[] for _ in range(num_tiles)]
    for (s, e) in windows:
        t0 = s // tile_elems
        t1 = min((e - 1) // tile_elems, num_tiles - 1)
        for t in range(t0, t1 + 1):
            per_tile[t].append((s, e))

    num_slots = max(1, max((len(v) for v in per_tile), default=1))
    counts_l, starts_l, ends_l = [], [], []
    for v in per_tile:
        counts_l.append(len(v))
        padded = v + [(0, 0)] * (num_slots - len(v))   # (0,0) = empty window
        for (s, e) in padded:
            starts_l.append(s)
            ends_l.append(e)

    counts = jnp.asarray(counts_l, dtype=jnp.int32)
    starts = jnp.asarray(starts_l, dtype=jnp.int32)
    ends = jnp.asarray(ends_l, dtype=jnp.int32)

    use_exp = float(emphasis_factor) > 0.0
    log_emphasis = math.log(float(emphasis_factor)) if use_exp else 0.0

    kernel = functools.partial(
        _peak_rmse_kernel,
        num_slots=num_slots,
        use_exp=use_exp,
        log_emphasis=log_emphasis,
        emphasis=float(emphasis_factor),
        block_rows=block_rows,
        rows_total=rows,
        n_elems=n,
    )

    out = pl.pallas_call(
        kernel,
        out_shape=jax.ShapeDtypeStruct((1, 1), jnp.float32),
        grid_spec=pltpu.PrefetchScalarGridSpec(
            num_scalar_prefetch=3,                 # counts, starts, ends -> SMEM
            grid=grid,
            in_specs=[
                pl.BlockSpec((block_rows, _LANES), lambda i, c, s, e: (i, 0)),
                pl.BlockSpec((block_rows, _LANES), lambda i, c, s, e: (i, 0)),
            ],
            out_specs=pl.BlockSpec(memory_space=pltpu.MemorySpace.SMEM),
            scratch_shapes=[pltpu.VMEM((8, _LANES), jnp.float32)],
        ),
        compiler_params=pltpu.CompilerParams(
            dimension_semantics=("arbitrary",)),
    )(counts, starts, ends, pred2, true2)
    return out[0, 0]


def _reference_loss(pred, true, peak_indices, distance=10, emphasis_factor=10.0):
    # Pure-JAX reference mirroring the PyTorch forward exactly.
    n = int(true.size)
    weights = jnp.ones((n,), jnp.float32)
    for peak in peak_indices:
        start = max(0, int(peak) - distance // 2)
        end = min(n, int(peak) + distance // 2)
        weights = weights.at[start:end].multiply(emphasis_factor)
    se = weights * (true.reshape(-1).astype(jnp.float32)
                    - pred.reshape(-1).astype(jnp.float32)) ** 2
    return jnp.sqrt(jnp.mean(se))


if __name__ == "__main__":
    key = jax.random.PRNGKey(0)
    k1, k2, k3, k4, k5, k6, k7, k8 = jax.random.split(key, 8)
    distance = 10
    emphasis_factor = 10.0

    # --- case 1: small spectrum, single tile with several peaks ---
    peaks1 = [50, 120, 200]
    n1 = 256
    true1 = jax.random.normal(k1, (n1,), dtype=jnp.float32)
    pred1 = jax.random.normal(k2, (n1,), dtype=jnp.float32)
    loss1 = jax.block_until_ready(modified_rmse_loss_peak_emphasis(
        pred1, true1, peaks1, distance=distance, emphasis_factor=emphasis_factor))
    ref1 = _reference_loss(pred1, true1, peaks1, distance, emphasis_factor)
    assert jnp.allclose(loss1, ref1, rtol=1e-5, atol=1e-6), (loss1, ref1)

    # --- case 2: non-multiple-of-128 length, 3 grid steps, overlapping &
    #             edge-clamped peaks (exercises multi-step accumulation) ---
    peaks2 = [3, 100, 104, 1500, 2998]
    n2 = 3000
    true2 = jax.random.normal(k3, (n2,), dtype=jnp.float32)
    pred2 = jax.random.normal(k4, (n2,), dtype=jnp.float32)
    loss2 = jax.block_until_ready(modified_rmse_loss_peak_emphasis(
        pred2, true2, peaks2, distance=distance,
        emphasis_factor=emphasis_factor, block_rows=8))
    ref2 = _reference_loss(pred2, true2, peaks2, distance, emphasis_factor)
    assert jnp.allclose(loss2, ref2, rtol=1e-5, atol=1e-6), (loss2, ref2)

    # --- case 3: peak-free middle tile (hot path) + partial last row-block ---
    peaks3 = [10]
    n3 = 5000
    true3 = jax.random.normal(k5, (n3,), dtype=jnp.float32)
    pred3 = jax.random.normal(k6, (n3,), dtype=jnp.float32)
    loss3 = jax.block_until_ready(modified_rmse_loss_peak_emphasis(
        pred3, true3, peaks3, distance=distance,
        emphasis_factor=emphasis_factor, block_rows=16))
    ref3 = _reference_loss(pred3, true3, peaks3, distance, emphasis_factor)
    assert jnp.allclose(loss3, ref3, rtol=1e-5, atol=1e-6), (loss3, ref3)

    # --- case 4: no peaks at all, exact 128-multiple (no pad, pure hot path) ---
    n4 = 1024
    true4 = jax.random.normal(k7, (n4,), dtype=jnp.float32)
    pred4 = jax.random.normal(k8, (n4,), dtype=jnp.float32)
    loss4 = jax.block_until_ready(modified_rmse_loss_peak_emphasis(
        pred4, true4, [], distance=distance, emphasis_factor=emphasis_factor))
    ref4 = _reference_loss(pred4, true4, [], distance, emphasis_factor)
    assert jnp.allclose(loss4, ref4, rtol=1e-5, atol=1e-6), (loss4, ref4)

    # --- case 5: bf16 inputs (halved HBM traffic path, 16-row sublane mult) ---
    peaks5 = [30, 900]
    n5 = 2048
    true5 = jax.random.normal(k1, (n5,), dtype=jnp.float32).astype(jnp.bfloat16)
    pred5 = jax.random.normal(k2, (n5,), dtype=jnp.float32).astype(jnp.bfloat16)
    loss5 = jax.block_until_ready(modified_rmse_loss_peak_emphasis(
        pred5, true5, peaks5, distance=distance, emphasis_factor=emphasis_factor))
    ref5 = _reference_loss(pred5, true5, peaks5, distance, emphasis_factor)
    assert jnp.allclose(loss5, ref5, rtol=1e-5, atol=1e-6), (loss5, ref5)

    print("KERNEL_OK")
</pallas_src>

<mosaic_0001>
module attributes {stable_mosaic.version = 11 : i64} {
  func.func @_peak_rmse_kernel(%arg0: i32, %arg1: memref<1xi32, #tpu.memory_space<smem>>, %arg2: memref<3xi32, #tpu.memory_space<smem>>, %arg3: memref<3xi32, #tpu.memory_space<smem>>, %arg4: memref<8x128xf32, #tpu.memory_space<vmem>>, %arg5: memref<8x128xf32, #tpu.memory_space<vmem>>, %arg6: memref<1x1xf32, #tpu.memory_space<smem>>, %arg7: memref<8x128xf32, #tpu.memory_space<vmem>>) attributes {dimension_semantics = [#tpu.dimension_semantics<arbitrary>], iteration_bounds = array<i64: 1>, scalar_prefetch = 3 : i64, scratch_operands = 1 : i64, tpu.core_type = #tpu.core_type<tc>, window_params = [{transform_indices = @transform_0, window_bounds = array<i64: 8, 128>}, {transform_indices = @transform_1, window_bounds = array<i64: 8, 128>}, {transform_indices = @transform_2, window_bounds = array<i64: 1, 1>}]} {
    %c0_i32 = arith.constant 0 : i32
    %0 = arith.cmpi eq, %arg0, %c0_i32 : i32
    %1 = arith.extui %0 : i1 to i32
    %c0_i32_0 = arith.constant 0 : i32
    %2 = arith.cmpi ne, %1, %c0_i32_0 : i32
    scf.if %2 {
      %cst = arith.constant 0.000000e+00 : f32
      %22 = vector.broadcast %cst : f32 to vector<8x128xf32>
      %c0_11 = arith.constant 0 : index
      %c0_12 = arith.constant 0 : index
      %23 = vector.load %arg7[%c0_11, %c0_12] : memref<8x128xf32, #tpu.memory_space<vmem>>, vector<8x128xf32>
      tpu.vector_store %arg7[%c0_11, %c0_12], %22 {strides = array<i32>} : memref<8x128xf32, #tpu.memory_space<vmem>>, vector<8x128xf32>,
    } else {
    }
    %c0 = arith.constant 0 : index
    %c0_1 = arith.constant 0 : index
    %3 = vector.load %arg5[%c0, %c0_1] : memref<8x128xf32, #tpu.memory_space<vmem>>, vector<8x128xf32>
    %c0_2 = arith.constant 0 : index
    %c0_3 = arith.constant 0 : index
    %4 = vector.load %arg4[%c0_2, %c0_3] : memref<8x128xf32, #tpu.memory_space<vmem>>, vector<8x128xf32>
    %5 = arith.subf %3, %4 : vector<8x128xf32>
    %6 = arith.mulf %5, %5 : vector<8x128xf32>
    %7 = arith.index_cast %arg0 : i32 to index
    %8 = memref.load %arg1[%7] : memref<1xi32, #tpu.memory_space<smem>>
    %c8_i32 = arith.constant 8 : i32
    %9 = arith.muli %arg0, %c8_i32 : i32
    %c8_i32_4 = arith.constant 8 : i32
    %10 = arith.subi %c8_i32_4, %9 : i32
    %c8_i32_5 = arith.constant 8 : i32
    %11 = arith.cmpi sge, %10, %c8_i32_5 : i32
    %c0_i32_6 = arith.constant 0 : i32
    %12 = arith.cmpi eq, %8, %c0_i32_6 : i32
    %13 = arith.andi %12, %11 : i1
    %14 = arith.extui %13 : i1 to i32
    %c0_i32_7 = arith.constant 0 : i32
    %15 = arith.cmpi ne, %14, %c0_i32_7 : i32
    scf.if %15 {
      %c0_11 = arith.constant 0 : index
      %c0_12 = arith.constant 0 : index
      %22 = vector.load %arg7[%c0_11, %c0_12] : memref<8x128xf32, #tpu.memory_space<vmem>>, vector<8x128xf32>
      %23 = vector.shape_cast %6 : vector<8x128xf32> to vector<1x8x128xf32>
      %cst = arith.constant dense<0.000000e+00> : vector<8x128xf32>
      %24 = vector.multi_reduction <add>, %23, %cst [0] : vector<1x8x128xf32> to vector<8x128xf32>
      %25 = arith.addf %22, %24 : vector<8x128xf32>
      %c0_13 = arith.constant 0 : index
      %c0_14 = arith.constant 0 : index
      %26 = vector.load %arg7[%c0_13, %c0_14] : memref<8x128xf32, #tpu.memory_space<vmem>>, vector<8x128xf32>
      tpu.vector_store %arg7[%c0_13, %c0_14], %25 {strides = array<i32>} : memref<8x128xf32, #tpu.memory_space<vmem>>, vector<8x128xf32>,
    } else {
    }
    %true = arith.constant true
    %16 = arith.xori %13, %true : i1
    %17 = arith.extui %16 : i1 to i32
    %c0_i32_8 = arith.constant 0 : i32
    %18 = arith.cmpi ne, %17, %c0_i32_8 : i32
    scf.if %18 {
      %22 = tpu.iota {dimensions = array<i32: 0>} : vector<8x128xi32>
      %23 = tpu.iota {dimensions = array<i32: 1>} : vector<8x128xi32>
      %c8_i32_11 = arith.constant 8 : i32
      %24 = arith.muli %arg0, %c8_i32_11 : i32
      %25 = vector.broadcast %24 : i32 to vector<8x128xi32>
      %26 = arith.addi %22, %25 : vector<8x128xi32>
      %c128_i32 = arith.constant 128 : i32
      %27 = vector.broadcast %c128_i32 : i32 to vector<8x128xi32>
      %28 = arith.muli %26, %27 : vector<8x128xi32>
      %29 = arith.addi %28, %23 : vector<8x128xi32>
      %c0_i32_12 = arith.constant 0 : i32
      %30 = vector.broadcast %c0_i32_12 : i32 to vector<8x128xi32>
      %c3_i32 = arith.constant 3 : i32
      %31 = arith.muli %arg0, %c3_i32 : i32
      %c0_i32_13 = arith.constant 0 : i32
      %32 = arith.addi %31, %c0_i32_13 : i32
      %33 = arith.index_cast %32 : i32 to index
      %34 = memref.load %arg2[%33] : memref<3xi32, #tpu.memory_space<smem>>
      %c3_i32_14 = arith.constant 3 : i32
      %35 = arith.muli %arg0, %c3_i32_14 : i32
      %c0_i32_15 = arith.constant 0 : i32
      %36 = arith.addi %35, %c0_i32_15 : i32
      %37 = arith.index_cast %36 : i32 to index
      %38 = memref.load %arg3[%37] : memref<3xi32, #tpu.memory_space<smem>>
      %39 = vector.broadcast %34 : i32 to vector<8x128xi32>
      %40 = arith.cmpi sge, %29, %39 : vector<8x128xi32>
      %41 = vector.broadcast %38 : i32 to vector<8x128xi32>
      %42 = arith.cmpi slt, %29, %41 : vector<8x128xi32>
      %43 = arith.andi %40, %42 : vector<8x128xi1>
      %44 = arith.extui %43 : vector<8x128xi1> to vector<8x128xi32>
      %45 = arith.addi %30, %44 : vector<8x128xi32>
      %c3_i32_16 = arith.constant 3 : i32
      %46 = arith.muli %arg0, %c3_i32_16 : i32
      %c1_i32 = arith.constant 1 : i32
      %47 = arith.addi %46, %c1_i32 : i32
      %48 = arith.index_cast %47 : i32 to index
      %49 = memref.load %arg2[%48] : memref<3xi32, #tpu.memory_space<smem>>
      %c3_i32_17 = arith.constant 3 : i32
      %50 = arith.muli %arg0, %c3_i32_17 : i32
      %c1_i32_18 = arith.constant 1 : i32
      %51 = arith.addi %50, %c1_i32_18 : i32
      %52 = arith.index_cast %51 : i32 to index
      %53 = memref.load %arg3[%52] : memref<3xi32, #tpu.memory_space<smem>>
      %54 = vector.broadcast %49 : i32 to vector<8x128xi32>
      %55 = arith.cmpi sge, %29, %54 : vector<8x128xi32>
      %56 = vector.broadcast %53 : i32 to vector<8x128xi32>
      %57 = arith.cmpi slt, %29, %56 : vector<8x128xi32>
      %58 = arith.andi %55, %57 : vector<8x128xi1>
      %59 = arith.extui %58 : vector<8x128xi1> to vector<8x128xi32>
      %60 = arith.addi %45, %59 : vector<8x128xi32>
      %c3_i32_19 = arith.constant 3 : i32
      %61 = arith.muli %arg0, %c3_i32_19 : i32
      %c2_i32 = arith.constant 2 : i32
      %62 = arith.addi %61, %c2_i32 : i32
      %63 = arith.index_cast %62 : i32 to index
      %64 = memref.load %arg2[%63] : memref<3xi32, #tpu.memory_space<smem>>
      %c3_i32_20 = arith.constant 3 : i32
      %65 = arith.muli %arg0, %c3_i32_20 : i32
      %c2_i32_21 = arith.constant 2 : i32
      %66 = arith.addi %65, %c2_i32_21 : i32
      %67 = arith.index_cast %66 : i32 to index
      %68 = memref.load %arg3[%67] : memref<3xi32, #tpu.memory_space<smem>>
      %69 = vector.broadcast %64 : i32 to vector<8x128xi32>
      %70 = arith.cmpi sge, %29, %69 : vector<8x128xi32>
      %71 = vector.broadcast %68 : i32 to vector<8x128xi32>
      %72 = arith.cmpi slt, %29, %71 : vector<8x128xi32>
      %73 = arith.andi %70, %72 : vector<8x128xi1>
      %74 = arith.extui %73 : vector<8x128xi1> to vector<8x128xi32>
      %75 = arith.addi %60, %74 : vector<8x128xi32>
      %76 = arith.sitofp %75 : vector<8x128xi32> to vector<8x128xf32>
      %cst = arith.constant 2.30258512 : f32
      %77 = vector.broadcast %cst : f32 to vector<8x128xf32>
      %78 = arith.mulf %76, %77 : vector<8x128xf32>
      %79 = math.exp %78 : vector<8x128xf32>
      %c256_i32 = arith.constant 256 : i32
      %80 = vector.broadcast %c256_i32 : i32 to vector<8x128xi32>
      %81 = arith.cmpi slt, %29, %80 : vector<8x128xi32>
      %82 = arith.mulf %79, %6 : vector<8x128xf32>
      %cst_22 = arith.constant 0.000000e+00 : f32
      %83 = vector.broadcast %cst_22 : f32 to vector<8x128xf32>
      %84 = arith.select %81, %82, %83 : vector<8x128xi1>, vector<8x128xf32>
      %c0_23 = arith.constant 0 : index
      %c0_24 = arith.constant 0 : index
      %85 = vector.load %arg7[%c0_23, %c0_24] : memref<8x128xf32, #tpu.memory_space<vmem>>, vector<8x128xf32>
      %86 = vector.shape_cast %84 : vector<8x128xf32> to vector<1x8x128xf32>
      %cst_25 = arith.constant dense<0.000000e+00> : vector<8x128xf32>
      %87 = vector.multi_reduction <add>, %86, %cst_25 [0] : vector<1x8x128xf32> to vector<8x128xf32>
      %88 = arith.addf %85, %87 : vector<8x128xf32>
      %c0_26 = arith.constant 0 : index
      %c0_27 = arith.constant 0 : index
      %89 = vector.load %arg7[%c0_26, %c0_27] : memref<8x128xf32, #tpu.memory_space<vmem>>, vector<8x128xf32>
      tpu.vector_store %arg7[%c0_26, %c0_27], %88 {strides = array<i32>} : memref<8x128xf32, #tpu.memory_space<vmem>>, vector<8x128xf32>,
    } else {
    }
    %c0_i32_9 = arith.constant 0 : i32
    %19 = arith.cmpi eq, %arg0, %c0_i32_9 : i32
    %20 = arith.extui %19 : i1 to i32
    %c0_i32_10 = arith.constant 0 : i32
    %21 = arith.cmpi ne, %20, %c0_i32_10 : i32
    scf.if %21 {
      %c0_11 = arith.constant 0 : index
      %c0_12 = arith.constant 0 : index
      %22 = vector.load %arg7[%c0_11, %c0_12] : memref<8x128xf32, #tpu.memory_space<vmem>>, vector<8x128xf32>
      %23 = vector.shape_cast %22 : vector<8x128xf32> to vector<1x8x128xf32>
      %cst = arith.constant dense<0.000000e+00> : vector<1xf32>
      %24 = vector.multi_reduction <add>, %23, %cst [1, 2] : vector<1x8x128xf32> to vector<1xf32>
      %25 = vector.shape_cast %24 : vector<1xf32> to vector<1x1x1xf32>
      %26 = vector.extract %25[0, 0, 0] : f32 from vector<1x1x1xf32>
      %cst_13 = arith.constant 2.560000e+02 : f32
      %27 = arith.divf %26, %cst_13 : f32
      %28 = math.sqrt %27 : f32
      %c0_14 = arith.constant 0 : index
      %c0_15 = arith.constant 0 : index
      %29 = memref.load %arg6[%c0_14, %c0_15] : memref<1x1xf32, #tpu.memory_space<smem>>
      memref.store %28, %arg6[%c0_14, %c0_15] : memref<1x1xf32, #tpu.memory_space<smem>>
    } else {
    }
    return
  }
  func.func @transform_0(%arg0: i32, %arg1: memref<1xi32, #tpu.memory_space<smem>>, %arg2: memref<3xi32, #tpu.memory_space<smem>>, %arg3: memref<3xi32, #tpu.memory_space<smem>>) -> (i32, i32) {
    %c0_i32 = arith.constant 0 : i32
    %c0_i32_0 = arith.constant 0 : i32
    return %arg0, %c0_i32 : i32, i32
  }
  func.func @transform_1(%arg0: i32, %arg1: memref<1xi32, #tpu.memory_space<smem>>, %arg2: memref<3xi32, #tpu.memory_space<smem>>, %arg3: memref<3xi32, #tpu.memory_space<smem>>) -> (i32, i32) {
    %c0_i32 = arith.constant 0 : i32
    %c0_i32_0 = arith.constant 0 : i32
    return %arg0, %c0_i32 : i32, i32
  }
  func.func @transform_2(%arg0: i32, %arg1: memref<1xi32, #tpu.memory_space<smem>>, %arg2: memref<3xi32, #tpu.memory_space<smem>>, %arg3: memref<3xi32, #tpu.memory_space<smem>>) -> (i32, i32) {
    %c0_i32 = arith.constant 0 : i32
    %c0_i32_0 = arith.constant 0 : i32
    %c0_i32_1 = arith.constant 0 : i32
    return %c0_i32, %c0_i32_0 : i32, i32
  }
}

</mosaic_0001>

<llo_original>
// kernel: tpu_custom_call.1
$region0: #{tpu_custom_call.1}
  #allocation0 [shape = 'u32[]', space=smem, size = 0x4, offset = 0x4, fixed_abs, tag = 'smem constant byte address 0x4 - core index']
  #allocation1 [shape = 'u32[144,128]{1,0:T(1,128)}', space=vmem, size = 0x12000, scoped, tag = 'internal scratch']
  #allocation2 [shape = 'f32[8,128]{1,0:T(8,128)}', space=vmem, size = 0x1000, scoped, tag = 'scratch operand']
  #allocation3 [shape = 's32[1]{0}', space=sflag, size = 0x4, scoped, tag = 'scoped memory for tpu_custom_call.1']
  #allocation4 [shape = 's32[1]{0:T(128)S(6)}', space=smem, size = 0x200, scoped, tag = 'prefetched SMEM operand 0']
  #allocation5 [shape = 'u8[512]{0}', space=smem, size = 0x200, scoped, tag = 'prefetched SMEM operand 1']
  #allocation6 [shape = 'u8[512]{0}', space=smem, size = 0x200, scoped, tag = 'prefetched SMEM operand 2']
  %s0 = inlined_call_operand.<no memory space> [shape: s32[1], index: 0, kind: input, shape index: {}]
  %s1 = inlined_call_operand.vmem [shape: s32[3], index: 1, kind: input, shape index: {}]
  %s2 = inlined_call_operand.vmem [shape: s32[3], index: 2, kind: input, shape index: {}]
  %s3 = inlined_call_operand.vmem [shape: f32[8,128], index: 3, kind: input, shape index: {}]
  %s4 = inlined_call_operand.hbm [shape: f32[8,128], index: 4, kind: input, shape index: {}]
  %s5 = inlined_call_operand.hbm [shape: f32[1,1], index: 5, kind: output, shape index: {}]
  %s6 = sld [smem:[#allocation0]]
  $region38: #{tpu_custom_call.1} parent=0
    _
  %s8 = ssub.s32 1, %s6
  %s9 = scalar_select 0, %s8, %s6
  %10 = sst [smem:[#allocation4]] %s0
  %s11 = sshll.u32 %s1, 4
  %s12 = int_to_ptr.vmem [resolvable:$true] %s11
  %14 = dma.vmem_to_smem %s12, 16, [#allocation5], [#allocation3]
  %s15 = sshll.u32 %s2, 4
  %s16 = int_to_ptr.vmem [resolvable:$true] %s15
  %18 = dma.vmem_to_smem %s16, 16, [#allocation6], [#allocation3]
  %19 = dma.done [#allocation3], 32
  %20 = sfence
  $region1: #{tpu_custom_call.1} parent=0
    #allocation7 [shape = 'u8[4096]{0}', space=vmem, size = 0x1000, scoped, tag = 'input window, operand 4, single buffered']
    #allocation8 [shape = 's32[1]{0}', space=sflag, size = 0x4, scoped, tag = 'scoped memory for tpu_custom_call.1']
    #allocation9 [shape = 's32[1]{0}', space=sflag, size = 0x4, scoped, tag = 'scoped memory for tpu_custom_call.1']
    #allocation10 [shape = 'u8[512]{0}', space=smem, size = 0x200, scoped, tag = 'output window, operand 0, single buffered']
    %21 = vsyncpa [#allocation8], 0
    %22 = vsyncpa [#allocation9], 0
    // Predicated region
    $region2: #{tpu_custom_call.1} parent=1 // pred_check
      _
    $region3: #{tpu_custom_call.1} parent=1 // pred_check_branch
      %24 = sbr.rel (0) target = $region5
    $region4: #{tpu_custom_call.1} parent=1 // pred_region
      _
    $region5: #{tpu_custom_call.1} parent=1 // pred_fallthru
      _
    // Predicated region
    $region6: #{tpu_custom_call.1} parent=1 // pred_check
      _
    $region7: #{tpu_custom_call.1} parent=1 // pred_check_branch
      %26 = sbr.rel (0) target = $region9
    $region8: #{tpu_custom_call.1} parent=1 // pred_region
      %s28 = ssub.s32 128, 128
      %29 = vsyncadd [#allocation8], %s28
      %s31 = sshll.u32 [#allocation7], 4
      %s32 = int_to_ptr.vmem [resolvable:$true] %s31
      %34 = dma.hbm_to_vmem [thread:$0]  %s4, 128, %s32, [#allocation8]
    $region9: #{tpu_custom_call.1} parent=1 // pred_fallthru
      _
    // Predicated region
    $region10: #{tpu_custom_call.1} parent=1 // pred_check
      _
    $region11: #{tpu_custom_call.1} parent=1 // pred_check_branch
      %36 = sbr.rel (0) target = $region13
    $region12: #{tpu_custom_call.1} parent=1 // pred_region
      %37 = dma.done [#allocation8], 128
    $region13: #{tpu_custom_call.1} parent=1 // pred_fallthru
      _
    %p38 = scmp.eq.s32.totalorder 0, 0
    // Predicated region
    $region14: #{tpu_custom_call.1} parent=1 // pred_check
      %p39 = pneg %p38
    $region15: #{tpu_custom_call.1} parent=1 // pred_check_branch
      %41 = sbr.rel (%p39) target = $region17
    $region16: #{tpu_custom_call.1} parent=1 // pred_region
      %42 = vst [vmem:[#allocation2] sm:$0xff] 0.0
    $region17: #{tpu_custom_call.1} parent=1 // pred_fallthru
      _
    %v43 = vld [vmem:[#allocation7] sm:$0xff]
    %v44 = vld [vmem:[%s3] sm:$0xff]
    %v45 = vsub.f32 %v43, %v44
    %v46 = vmul.f32 %v45, %v45
    %s47 = sld [smem:[#allocation4]]
    %s48 = smul.u32 0, 8
    %s49 = ssub.s32 8, %s48
    %p50 = scmp.ge.s32.totalorder %s49, 8
    %p51 = scmp.eq.s32.totalorder %s47, 0
    %p52 = pnand %p51, %p50
    %p53 = pneg %p52
    // Predicated region
    $region18: #{tpu_custom_call.1} parent=1 // pred_check
      _
    $region19: #{tpu_custom_call.1} parent=1 // pred_check_branch
      %55 = sbr.rel (%p52) target = $region21
    $region20: #{tpu_custom_call.1} parent=1 // pred_region
      %v56 = vld [vmem:[#allocation2] sm:$0xff]
      %v57 = vadd.f32 %v46, 0.0
      %v58 = vadd.f32 %v56, %v57
      %59 = vst [vmem:[#allocation2] sm:$0xff] %v58
    $region21: #{tpu_custom_call.1} parent=1 // pred_fallthru
      _
    %p60 = pneg %p53
    // Predicated region
    $region22: #{tpu_custom_call.1} parent=1 // pred_check
      _
    $region23: #{tpu_custom_call.1} parent=1 // pred_check_branch
      %62 = sbr.rel (%p53) target = $region25
    $region24: #{tpu_custom_call.1} parent=1 // pred_region
      %v63 = vlaneseq
      %v64 = vshrl.u32 %v63, 7
      %v65 = vlaneseq
      %v66 = vand.u32 %v65, 127
      %v67 = vstv %s48
      %v68 = vadd.s32 %v64, %v67
      %v69 = vmul.u32 %v68, 128
      %v70 = vadd.s32 %v69, %v66
      %s71 = smul.u32 0, 3
      %s72 = sld [smem:[#allocation5 + %s71]]
      %s73 = sld [smem:[#allocation6 + %s71]]
      %v74 = vstv %s72
      %vm75 = vcmp.ge.s32.totalorder %v70, %v74
      %v76 = vstv %s73
      %vm77 = vcmp.lt.s32.totalorder %v70, %v76
      %vm78 = vmand %vm75, %vm77
      %v79 = vsel %vm78, 1, 0
      %s80 = sadd.s32 %s71, 1
      %s81 = sld [smem:[#allocation5 + %s80]]
      %s82 = sld [smem:[#allocation6 + %s80]]
      %v83 = vstv %s81
      %vm84 = vcmp.ge.s32.totalorder %v70, %v83
      %v85 = vstv %s82
      %vm86 = vcmp.lt.s32.totalorder %v70, %v85
      %vm87 = vmand %vm84, %vm86
      %v88 = vsel %vm87, 1, 0
      %v89 = vadd.s32 %v79, %v88
      %s90 = sadd.s32 %s71, 2
      %s91 = sld [smem:[#allocation5 + %s90]]
      %s92 = sld [smem:[#allocation6 + %s90]]
      %v93 = vstv %s91
      %vm94 = vcmp.ge.s32.totalorder %v70, %v93
      %v95 = vstv %s92
      %vm96 = vcmp.lt.s32.totalorder %v70, %v95
      %vm97 = vmand %vm94, %vm96
      %v98 = vsel %vm97, 1, 0
      %v99 = vadd.s32 %v89, %v98
      %v100 = vcvt.s32.f32 %v99
      %v101 = vmul.f32 %v100, 2.3025851
      %v102 = vmul.f32 %v101, 1.442695
      %v103 = vpow.pop %v102
      %vm104 = vcmp.lt.s32.totalorder %v70, 256
      %v105 = vmul.f32 %v103, %v46
      %v106 = vsel %vm104, %v105, 0.0
      %v107 = vld [vmem:[#allocation2] sm:$0xff]
      %v108 = vadd.f32 %v106, 0.0
      %v109 = vadd.f32 %v107, %v108
      %110 = vst [vmem:[#allocation2] sm:$0xff] %v109
    $region25: #{tpu_custom_call.1} parent=1 // pred_fallthru
      _
    // Predicated region
    $region26: #{tpu_custom_call.1} parent=1 // pred_check
      %p111 = pneg %p38
    $region27: #{tpu_custom_call.1} parent=1 // pred_check_branch
      %113 = sbr.rel (%p111) target = $region29
    $region28: #{tpu_custom_call.1} parent=1 // pred_region
      %v114 = vld [vmem:[#allocation2] sm:$0xff]
      %115 = vadd.xlane.f32.xlu0 %v114
      %v116 = vpop.xlane.xlu0 %115
      %v117 = vrot.slane %v116, 4
      %v118 = vadd.f32 %v116, %v117
      %v119 = vrot.slane %v118, 2
      %v120 = vadd.f32 %v118, %v119
      %v121 = vrot.slane %v120, 1
      %v122 = vadd.f32 %v120, %v121
      %s123 = vtos %v122
      %v124 = vrcp.pop 256.0
      %s125 = vtos %v124
      %s126 = smul.f32 %s123, %s125
      %v127 = vstv %s126
      %v128 = vrsqrt.pop %v127
      %v129 = vmul.f32 %v127, %v128
      %vm130 = vcmp.eq.f32.partialorder %v127, inf
      %v131 = vsel %vm130, %v127, %v129
      %vm132 = vcmp.eq.f32.partialorder %v127, 0.0
      %v133 = vand.u32 %v127, 2147483648
      %v134 = vsel %vm132, %v133, %v131
      %s135 = vtos %v134
      %s136 = scalar_lea.smem [#allocation10], 0
      %137 = sst [smem:[%s136]] %s135
    $region29: #{tpu_custom_call.1} parent=1 // pred_fallthru
      _
    // Predicated region
    $region30: #{tpu_custom_call.1} parent=1 // pred_check
      _
    $region31: #{tpu_custom_call.1} parent=1 // pred_check_branch
      %139 = sbr.rel (0) target = $region33
    $region32: #{tpu_custom_call.1} parent=1 // pred_region
      %s141 = ssub.s32 16, 16
      %142 = vsyncadd [#allocation9], %s141
      %145 = dma.smem_to_hbm [#allocation10], 16, %s5, [#allocation9]
    $region33: #{tpu_custom_call.1} parent=1 // pred_fallthru
      _
    // Predicated region
    $region34: #{tpu_custom_call.1} parent=1 // pred_check
      _
    $region35: #{tpu_custom_call.1} parent=1 // pred_check_branch
      %147 = sbr.rel (0) target = $region37
    $region36: #{tpu_custom_call.1} parent=1 // pred_region
      %148 = dma.done [#allocation9], 16
    $region37: #{tpu_custom_call.1} parent=1 // pred_fallthru
      _
    %149 = sfence
    %150 = vsyncpa [#allocation8], 1
    %151 = vsyncpa [#allocation9], 1

</llo_original>
